<compile_context>
chip_gen: v7x
topology: tpu7x:2x2x1
jax: 0.10.0
libtpu: 0.0.40
codegen_flags: <defaults>
</compile_context>

<pallas_src>
import functools
import numpy as np
import jax
import jax.numpy as jnp
from jax.experimental import pallas as pl
from jax.experimental.pallas import tpu as pltpu


def bottleneck_kernel(x_ref, w1_ref, w2_ref, w3_ref, b_ref, m_ref, o_ref,
                      *, H, W, B, cw, cout):
    """x_ref: (B, Cin, L); w1: (cw, Cin); w2: (cw, 9*cw); w3: (cout, cw);
    b_ref: (2*cw + cout, 1) packed biases; m_ref: (9*cw, L) border masks."""
    L = H * W

    w1 = w1_ref[...]
    w2 = w2_ref[...]
    w3 = w3_ref[...]
    b1 = b_ref[0:cw, :]                       # (cw, 1)
    b2 = b_ref[cw:2 * cw, :]                  # (cw, 1)
    b3 = b_ref[2 * cw:2 * cw + cout, :]       # (cout, 1)

    for b in range(B):                        # static, unrolled
        # ---- conv1 (1x1) + bn1 + relu  (BN scale folded into w1) ---------
        h1 = jnp.dot(w1, x_ref[b], preferred_element_type=jnp.float32)
        h1 = jnp.maximum(h1 + b1, 0.0)        # (cw, L)

        # ---- conv2 (3x3, pad=1, stride=1) + bn2 + relu --------------------
        # im2col on lanes: 9 lane-rolled copies of h1, tile-aligned concat
        # (cw is a multiple of 8), one border-mask multiply, one MXU push.
        parts = []
        for oy in (-1, 0, 1):
            for ox in (-1, 0, 1):
                off = oy * W + ox
                if off == 0:
                    parts.append(h1)
                else:
                    parts.append(pltpu.roll(h1, shift=(-off) % L, axis=1))
        patches = jnp.concatenate(parts, axis=0) * m_ref[...]   # (9*cw, L)
        h2 = jnp.dot(w2, patches, preferred_element_type=jnp.float32)
        h2 = jnp.maximum(h2 + b2, 0.0)        # (cw, L)

        # ---- conv3 (1x1) + bn3 + residual + relu --------------------------
        h3 = jnp.dot(w3, h2, preferred_element_type=jnp.float32) + b3
        o_ref[b] = jnp.maximum(h3 + x_ref[b], 0.0)   # Cin == Cout


def bottleneck_forward(x_nchw, params, eps=1e-5, images_per_step=None):
    """x_nchw: (N, Cin, H, W) float32. Returns (N, Cout, H, W)."""
    N, Cin, H, W = x_nchw.shape
    L = H * W

    def fold(gamma, beta, mean, var):
        s = gamma / jnp.sqrt(var + eps)
        return s, beta - mean * s

    s1, t1 = fold(*params['bn1'])
    s2, t2 = fold(*params['bn2'])
    s3, t3 = fold(*params['bn3'])

    Cw = params['w1'].shape[0]
    Cout = params['w3'].shape[0]
    assert Cout == Cin, "identity residual requires Cin == Cout (no downsample)"
    Cw_p = ((Cw + 7) // 8) * 8                # sublane-tile aligned width

    # Fold BN scale into conv weights; zero-pad the bottleneck width to Cw_p.
    w1 = params['w1'][:, :, 0, 0] * s1[:, None]                       # (Cw, Cin)
    w1p = jnp.zeros((Cw_p, Cin), jnp.float32).at[:Cw].set(w1)
    w2f = params['w2'] * s2[:, None, None, None]                      # (Cw, Cw, 3, 3)
    w2p = jnp.zeros((Cw_p, Cw_p, 3, 3), jnp.float32).at[:Cw, :Cw].set(w2f)
    # column index of im2col patch matrix = (ky*3 + kx)*Cw_p + c_in
    w2m = jnp.transpose(w2p, (0, 2, 3, 1)).reshape(Cw_p, 9 * Cw_p)    # (Cw_p, 9*Cw_p)
    w3 = params['w3'][:, :, 0, 0] * s3[:, None]                       # (Cout, Cw)
    w3p = jnp.zeros((Cout, Cw_p), jnp.float32).at[:, :Cw].set(w3)

    # Packed per-channel biases: [b1 (Cw_p) | b2 (Cw_p) | b3 (Cout)].
    b1p = jnp.zeros((Cw_p,), jnp.float32).at[:Cw].set(t1)
    b2p = jnp.zeros((Cw_p,), jnp.float32).at[:Cw].set(t2)
    bias = jnp.concatenate([b1p, b2p, t3])[:, None]                   # (2*Cw_p+Cout, 1)

    # Precomputed 3x3 border masks, one (Cw_p, L) block per tap, tap order
    # matching the im2col concat / w2m column layout.
    lane = jnp.arange(L)
    xpos = lane % W
    ypos = lane // W
    mrows = []
    for oy in (-1, 0, 1):
        for ox in (-1, 0, 1):
            valid = ((ypos + oy >= 0) & (ypos + oy < H) &
                     (xpos + ox >= 0) & (xpos + ox < W))
            mrows.append(jnp.broadcast_to(
                valid.astype(jnp.float32)[None, :], (Cw_p, L)))
    masks = jnp.concatenate(mrows, axis=0)                            # (9*Cw_p, L)

    # Images per grid step: as many as possible while keeping >= 2 steps when
    # N >= 2 (both v7x TensorCores stay busy); B=1 is the floor.
    if images_per_step is None:
        target_steps = 2 if N >= 2 else 1
        B = 1
        for d in range(min(N, 8), 0, -1):
            if N % d == 0 and (N // d) >= target_steps:
                B = d
                break
    else:
        B = images_per_step
        assert N % B == 0

    # Free views — no HBM transposes.
    x3d = x_nchw.reshape(N, Cin, L)

    kernel = functools.partial(bottleneck_kernel, H=H, W=W, B=B,
                               cw=Cw_p, cout=Cout)

    out3d = pl.pallas_call(
        kernel,
        out_shape=jax.ShapeDtypeStruct((N, Cout, L), jnp.float32),
        grid_spec=pltpu.PrefetchScalarGridSpec(
            num_scalar_prefetch=0,
            grid=(N // B,),
            in_specs=[
                pl.BlockSpec((B, Cin, L), lambda n: (n, 0, 0)),
                pl.BlockSpec((Cw_p, Cin), lambda n: (0, 0)),
                pl.BlockSpec((Cw_p, 9 * Cw_p), lambda n: (0, 0)),
                pl.BlockSpec((Cout, Cw_p), lambda n: (0, 0)),
                pl.BlockSpec((2 * Cw_p + Cout, 1), lambda n: (0, 0)),
                pl.BlockSpec((9 * Cw_p, L), lambda n: (0, 0)),
            ],
            out_specs=pl.BlockSpec((B, Cout, L), lambda n: (n, 0, 0)),
        ),
        compiler_params=pltpu.CompilerParams(
            dimension_semantics=("parallel",)),
    )(x3d, w1p, w2m, w3p, bias, masks)

    return out3d.reshape(N, Cout, H, W)


# ----------------------------- reference ----------------------------------
def ref_bottleneck(x, params, eps=1e-5):
    def conv(x, w, stride=1, padding=0):
        return jax.lax.conv_general_dilated(
            x, w, window_strides=(stride, stride),
            padding=[(padding, padding), (padding, padding)],
            dimension_numbers=('NCHW', 'OIHW', 'NCHW'))

    def bn(x, gamma, beta, mean, var):
        s = gamma / jnp.sqrt(var + eps)
        return x * s[None, :, None, None] + (beta - mean * s)[None, :, None, None]

    out = jax.nn.relu(bn(conv(x, params['w1']), *params['bn1']))
    out = jax.nn.relu(bn(conv(out, params['w2'], padding=1), *params['bn2']))
    out = bn(conv(out, params['w3']), *params['bn3'])
    return jax.nn.relu(out + x)


def make_params(key, inplanes, planes, expansion=4, base_width=64, groups=1):
    width = int(planes * (base_width / 64.0)) * groups
    outplanes = planes * expansion
    ks = jax.random.split(key, 12)

    def bn_params(k, c):
        k1, k2, k3, k4 = jax.random.split(k, 4)
        gamma = 1.0 + 0.1 * jax.random.normal(k1, (c,), jnp.float32)
        beta = 0.1 * jax.random.normal(k2, (c,), jnp.float32)
        mean = 0.1 * jax.random.normal(k3, (c,), jnp.float32)
        var = jnp.abs(jax.random.normal(k4, (c,), jnp.float32)) + 0.5
        return (gamma, beta, mean, var)

    return {
        'w1': 0.1 * jax.random.normal(ks[0], (width, inplanes, 1, 1), jnp.float32),
        'w2': 0.1 * jax.random.normal(ks[1], (width, width, 3, 3), jnp.float32),
        'w3': 0.1 * jax.random.normal(ks[2], (outplanes, width, 1, 1), jnp.float32),
        'bn1': bn_params(ks[3], width),
        'bn2': bn_params(ks[4], width),
        'bn3': bn_params(ks[5], outplanes),
    }


if __name__ == "__main__":
    key = jax.random.PRNGKey(0)
    N, planes, H, W = 2, 4, 16, 16
    inplanes = planes * 4                            # so identity add is valid
    kx, kp = jax.random.split(key)
    x = jax.random.normal(kx, (N, inplanes, H, W), jnp.float32)
    params = make_params(kp, inplanes, planes)

    out = jax.block_until_ready(bottleneck_forward(x, params))
    ref = jax.block_until_ready(ref_bottleneck(x, params))

    np.testing.assert_allclose(np.asarray(out), np.asarray(ref),
                               rtol=1e-4, atol=1e-4)
    print("KERNEL_OK")
</pallas_src>

<mosaic_0001>
module attributes {stable_mosaic.version = 11 : i64} {
  func.func @bottleneck_kernel(%arg0: i32, %arg1: memref<1x16x256xf32, #tpu.memory_space<vmem>>, %arg2: memref<8x16xf32, #tpu.memory_space<vmem>>, %arg3: memref<8x72xf32, #tpu.memory_space<vmem>>, %arg4: memref<16x8xf32, #tpu.memory_space<vmem>>, %arg5: memref<32x1xf32, #tpu.memory_space<vmem>>, %arg6: memref<72x256xf32, #tpu.memory_space<vmem>>, %arg7: memref<1x16x256xf32, #tpu.memory_space<vmem>>) attributes {dimension_semantics = [#tpu.dimension_semantics<parallel>], iteration_bounds = array<i64: 2>, scalar_prefetch = 0 : i64, scratch_operands = 0 : i64, tpu.core_type = #tpu.core_type<tc>, window_params = [{transform_indices = @transform_0, window_bounds = array<i64: 1, 16, 256>}, {pipeline_mode = #tpu.pipeline_mode<synchronous>, transform_indices = @transform_1, window_bounds = array<i64: 8, 16>}, {pipeline_mode = #tpu.pipeline_mode<synchronous>, transform_indices = @transform_2, window_bounds = array<i64: 8, 72>}, {pipeline_mode = #tpu.pipeline_mode<synchronous>, transform_indices = @transform_3, window_bounds = array<i64: 16, 8>}, {pipeline_mode = #tpu.pipeline_mode<synchronous>, transform_indices = @transform_4, window_bounds = array<i64: 32, 1>}, {pipeline_mode = #tpu.pipeline_mode<synchronous>, transform_indices = @transform_5, window_bounds = array<i64: 72, 256>}, {transform_indices = @transform_6, window_bounds = array<i64: 1, 16, 256>}]} {
    %c0 = arith.constant 0 : index
    %c0_0 = arith.constant 0 : index
    %0 = vector.load %arg2[%c0, %c0_0] : memref<8x16xf32, #tpu.memory_space<vmem>>, vector<8x16xf32>
    %c0_1 = arith.constant 0 : index
    %c0_2 = arith.constant 0 : index
    %1 = vector.load %arg3[%c0_1, %c0_2] : memref<8x72xf32, #tpu.memory_space<vmem>>, vector<8x72xf32>
    %c0_3 = arith.constant 0 : index
    %c0_4 = arith.constant 0 : index
    %2 = vector.load %arg4[%c0_3, %c0_4] : memref<16x8xf32, #tpu.memory_space<vmem>>, vector<16x8xf32>
    %c0_5 = arith.constant 0 : index
    %c0_6 = arith.constant 0 : index
    %3 = vector.load %arg5[%c0_5, %c0_6] : memref<32x1xf32, #tpu.memory_space<vmem>>, vector<8x1xf32>
    %c8 = arith.constant 8 : index
    %c0_7 = arith.constant 0 : index
    %4 = vector.load %arg5[%c8, %c0_7] : memref<32x1xf32, #tpu.memory_space<vmem>>, vector<8x1xf32>
    %c16 = arith.constant 16 : index
    %c0_8 = arith.constant 0 : index
    %5 = vector.load %arg5[%c16, %c0_8] : memref<32x1xf32, #tpu.memory_space<vmem>>, vector<16x1xf32>
    %c0_9 = arith.constant 0 : index
    %c0_10 = arith.constant 0 : index
    %c0_11 = arith.constant 0 : index
    %6 = vector.load %arg1[%c0_9, %c0_10, %c0_11] : memref<1x16x256xf32, #tpu.memory_space<vmem>>, vector<1x16x256xf32>
    %7 = vector.shape_cast %6 : vector<1x16x256xf32> to vector<16x256xf32>
    %cst = arith.constant dense<0.000000e+00> : vector<8x256xf32>
    %8 = tpu.matmul %0, %7, %cst {dimension_numbers = #tpu.dot_dimension_numbers<[1], [0], [0], [1], [0, 0, 1, 1], [], []>} : vector<8x16xf32>, vector<16x256xf32>, vector<8x256xf32> -> vector<8x256xf32>
    %9 = vector.broadcast %3 : vector<8x1xf32> to vector<8x256xf32>
    %10 = arith.addf %8, %9 : vector<8x256xf32>
    %cst_12 = arith.constant 0.000000e+00 : f32
    %11 = vector.broadcast %cst_12 : f32 to vector<8x256xf32>
    %12 = arith.maximumf %10, %11 : vector<8x256xf32>
    %c17_i32 = arith.constant 17 : i32
    %13 = tpu.dynamic_rotate %12 by %c17_i32 dim 1 : vector<8x256xf32>, i32 -> vector<8x256xf32>
    %c16_i32 = arith.constant 16 : i32
    %14 = tpu.dynamic_rotate %12 by %c16_i32 dim 1 : vector<8x256xf32>, i32 -> vector<8x256xf32>
    %c15_i32 = arith.constant 15 : i32
    %15 = tpu.dynamic_rotate %12 by %c15_i32 dim 1 : vector<8x256xf32>, i32 -> vector<8x256xf32>
    %c1_i32 = arith.constant 1 : i32
    %16 = tpu.dynamic_rotate %12 by %c1_i32 dim 1 : vector<8x256xf32>, i32 -> vector<8x256xf32>
    %c255_i32 = arith.constant 255 : i32
    %17 = tpu.dynamic_rotate %12 by %c255_i32 dim 1 : vector<8x256xf32>, i32 -> vector<8x256xf32>
    %c241_i32 = arith.constant 241 : i32
    %18 = tpu.dynamic_rotate %12 by %c241_i32 dim 1 : vector<8x256xf32>, i32 -> vector<8x256xf32>
    %c240_i32 = arith.constant 240 : i32
    %19 = tpu.dynamic_rotate %12 by %c240_i32 dim 1 : vector<8x256xf32>, i32 -> vector<8x256xf32>
    %c239_i32 = arith.constant 239 : i32
    %20 = tpu.dynamic_rotate %12 by %c239_i32 dim 1 : vector<8x256xf32>, i32 -> vector<8x256xf32>
    %21 = tpu.concatenate %13, %14, %15, %16, %12, %17, %18, %19, %20 in 0 : vector<8x256xf32>, vector<8x256xf32>, vector<8x256xf32>, vector<8x256xf32>, vector<8x256xf32>, vector<8x256xf32>, vector<8x256xf32>, vector<8x256xf32>, vector<8x256xf32> -> vector<72x256xf32>
    %c0_13 = arith.constant 0 : index
    %c0_14 = arith.constant 0 : index
    %22 = vector.load %arg6[%c0_13, %c0_14] : memref<72x256xf32, #tpu.memory_space<vmem>>, vector<72x256xf32>
    %23 = arith.mulf %21, %22 : vector<72x256xf32>
    %cst_15 = arith.constant dense<0.000000e+00> : vector<8x256xf32>
    %24 = tpu.matmul %1, %23, %cst_15 {dimension_numbers = #tpu.dot_dimension_numbers<[1], [0], [0], [1], [0, 0, 1, 1], [], []>} : vector<8x72xf32>, vector<72x256xf32>, vector<8x256xf32> -> vector<8x256xf32>
    %25 = vector.broadcast %4 : vector<8x1xf32> to vector<8x256xf32>
    %26 = arith.addf %24, %25 : vector<8x256xf32>
    %cst_16 = arith.constant 0.000000e+00 : f32
    %27 = vector.broadcast %cst_16 : f32 to vector<8x256xf32>
    %28 = arith.maximumf %26, %27 : vector<8x256xf32>
    %cst_17 = arith.constant dense<0.000000e+00> : vector<16x256xf32>
    %29 = tpu.matmul %2, %28, %cst_17 {dimension_numbers = #tpu.dot_dimension_numbers<[1], [0], [0], [1], [0, 0, 1, 1], [], []>} : vector<16x8xf32>, vector<8x256xf32>, vector<16x256xf32> -> vector<16x256xf32>
    %30 = vector.broadcast %5 : vector<16x1xf32> to vector<16x256xf32>
    %31 = arith.addf %29, %30 : vector<16x256xf32>
    %c0_18 = arith.constant 0 : index
    %c0_19 = arith.constant 0 : index
    %c0_20 = arith.constant 0 : index
    %32 = vector.load %arg1[%c0_18, %c0_19, %c0_20] : memref<1x16x256xf32, #tpu.memory_space<vmem>>, vector<1x16x256xf32>
    %33 = vector.shape_cast %32 : vector<1x16x256xf32> to vector<16x256xf32>
    %34 = arith.addf %31, %33 : vector<16x256xf32>
    %cst_21 = arith.constant 0.000000e+00 : f32
    %35 = vector.broadcast %cst_21 : f32 to vector<16x256xf32>
    %36 = arith.maximumf %34, %35 : vector<16x256xf32>
    %c0_22 = arith.constant 0 : index
    %c0_23 = arith.constant 0 : index
    %c0_24 = arith.constant 0 : index
    %37 = vector.load %arg7[%c0_22, %c0_23, %c0_24] : memref<1x16x256xf32, #tpu.memory_space<vmem>>, vector<1x16x256xf32>
    %38 = vector.shape_cast %37 : vector<1x16x256xf32> to vector<16x256xf32>
    %39 = vector.shape_cast %36 : vector<16x256xf32> to vector<1x16x256xf32>
    tpu.vector_store %arg7[%c0_22, %c0_23, %c0_24], %39 {strides = array<i32>} : memref<1x16x256xf32, #tpu.memory_space<vmem>>, vector<1x16x256xf32>,
    return
  }
  func.func @transform_0(%arg0: i32) -> (i32, i32, i32) {
    %c0_i32 = arith.constant 0 : i32
    %c0_i32_0 = arith.constant 0 : i32
    %c0_i32_1 = arith.constant 0 : i32
    return %arg0, %c0_i32, %c0_i32_0 : i32, i32, i32
  }
  func.func @transform_1(%arg0: i32) -> (i32, i32) {
    %c0_i32 = arith.constant 0 : i32
    %c0_i32_0 = arith.constant 0 : i32
    %c0_i32_1 = arith.constant 0 : i32
    return %c0_i32, %c0_i32_0 : i32, i32
  }
  func.func @transform_2(%arg0: i32) -> (i32, i32) {
    %c0_i32 = arith.constant 0 : i32
    %c0_i32_0 = arith.constant 0 : i32
    %c0_i32_1 = arith.constant 0 : i32
    return %c0_i32, %c0_i32_0 : i32, i32
  }
  func.func @transform_3(%arg0: i32) -> (i32, i32) {
    %c0_i32 = arith.constant 0 : i32
    %c0_i32_0 = arith.constant 0 : i32
    %c0_i32_1 = arith.constant 0 : i32
    return %c0_i32, %c0_i32_0 : i32, i32
  }
  func.func @transform_4(%arg0: i32) -> (i32, i32) {
    %c0_i32 = arith.constant 0 : i32
    %c0_i32_0 = arith.constant 0 : i32
    %c0_i32_1 = arith.constant 0 : i32
    return %c0_i32, %c0_i32_0 : i32, i32
  }
  func.func @transform_5(%arg0: i32) -> (i32, i32) {
    %c0_i32 = arith.constant 0 : i32
    %c0_i32_0 = arith.constant 0 : i32
    %c0_i32_1 = arith.constant 0 : i32
    return %c0_i32, %c0_i32_0 : i32, i32
  }
  func.func @transform_6(%arg0: i32) -> (i32, i32, i32) {
    %c0_i32 = arith.constant 0 : i32
    %c0_i32_0 = arith.constant 0 : i32
    %c0_i32_1 = arith.constant 0 : i32
    return %arg0, %c0_i32, %c0_i32_0 : i32, i32, i32
  }
}

</mosaic_0001>

<llo_original>
// kernel: tpu_custom_call.1
$region0: #{tpu_custom_call.1}
  #allocation0 [shape = 'u32[]', space=smem, size = 0x4, offset = 0x4, fixed_abs, tag = 'smem constant byte address 0x4 - core index']
  #allocation1 [shape = 'u32[144,128]{1,0:T(1,128)}', space=vmem, size = 0x12000, scoped, tag = 'internal scratch']
  %s0 = inlined_call_operand.hbm [shape: f32[2,16,256], index: 0, kind: input, shape index: {}]
  %s1 = inlined_call_operand.vmem [shape: f32[8,16], index: 1, kind: input, shape index: {}]
  %s2 = inlined_call_operand.vmem [shape: f32[8,72], index: 2, kind: input, shape index: {}]
  %s3 = inlined_call_operand.vmem [shape: f32[16,8], index: 3, kind: input, shape index: {}]
  %s4 = inlined_call_operand.vmem [shape: f32[32,1], index: 4, kind: input, shape index: {}]
  %s5 = inlined_call_operand.hbm [shape: f32[72,256], index: 5, kind: input, shape index: {}]
  %s6 = inlined_call_operand.hbm [shape: f32[2,16,256], index: 6, kind: output, shape index: {}]
  %s7 = sld [smem:[#allocation0]]
  $region65: #{tpu_custom_call.1} parent=0
    _
  %s9 = ssub.s32 1, %s7
  %s10 = scalar_select 0, %s9, %s7
  $region1: #{tpu_custom_call.1} parent=0
    #allocation2 [shape = 'u8[32768]{0}', space=vmem, size = 0x8000, scoped, tag = 'input window, operand 0']
    #allocation3 [shape = 's32[2]{0}', space=sflag, size = 0x8, scoped, tag = 'scoped memory for tpu_custom_call.1']
    #allocation4 [shape = 's32[2]{0}', space=sflag, size = 0x8, scoped, tag = 'scoped memory for tpu_custom_call.1']
    #allocation5 [shape = 'u8[73728]{0}', space=vmem, size = 0x12000, scoped, tag = 'input window, operand 5, single buffered']
    #allocation6 [shape = 's32[1]{0}', space=sflag, size = 0x4, scoped, tag = 'scoped memory for tpu_custom_call.1']
    #allocation7 [shape = 'u8[32768]{0}', space=vmem, size = 0x8000, scoped, tag = 'output window, operand 0']
    %11 = vsyncpa [#allocation3], 0
    %s12 = scalar_lea.sflag [#allocation3], 1
    %13 = vsyncpa %s12, 0
    %14 = vsyncpa [#allocation6], 0
    %15 = vsyncpa [#allocation4], 0
    %s16 = scalar_lea.sflag [#allocation4], 1
    %17 = vsyncpa %s16, 0
    loop: start=0, step=1, limit=4
    $region2: #{tpu_custom_call.1} parent=1 // loop_pre_header
      _
    $region3: #{tpu_custom_call.1} parent=1 // loop_header
      %s19 = sphi 0, %s23
      %p20 = scmp.ge.s32.totalorder %s19, 4
      %s29 = sphi 0, %s31
      %s32 = sphi 0, %s29
      %s33 = sphi 0, %s32
      %s49 = sphi 0, %s33
      %s53 = sphi 0, %s53
      %s55 = sphi 0, %s53
      %s56 = sphi 0, %s55
      %s70 = sphi 0, %s56
      %s74 = sphi 0, %s74
      %s76 = sphi 0, %s74
      %s77 = sphi 0, %s76
      %s91 = sphi 0, %s77
      %s95 = sphi 0, %s95
      %s97 = sphi 0, %s95
      %s98 = sphi 0, %s97
      %s112 = sphi 0, %s98
      %s116 = sphi 0, %s116
      %s118 = sphi 0, %s116
      %s119 = sphi 0, %s118
      %s133 = sphi 0, %s119
      %s137 = sphi 0, %s137
      %s139 = sphi 0, %s137
      %s140 = sphi 0, %s139
      %s154 = sphi 0, %s140
      %s160 = sphi 0, %s162
      %s163 = sphi 0, %s160
      %s164 = sphi 0, %s163
      %s180 = sphi 0, %s164
    $region4: #{tpu_custom_call.1} parent=1 // loop_header_branch
      %22 = sbr.rel (%p20) target = $region8
    $region5: #{tpu_custom_call.1} parent=1 // loop_body
      %s24 = ssub.s32 %s19, 1
      %s25 = ssub.s32 %s19, 2
      %s26 = sadd.s32 %s19, 1
      %s27 = ssub.s32 %s19, %s26
      %p28 = scmp.eq.s32.totalorder %s27, 0
      %s30 = sadd.s32 %s29, 1
      %s31 = scalar_select %p28, %s29, %s30
      %p34 = pneg %p28
      %p35 = scmp.eq.s32.totalorder %s19, 1
      %p36 = por %p34, %p35
      %p37 = scmp.ne.s32.totalorder %s29, %s32
      %p38 = scmp.eq.s32.totalorder %s19, 0
      %p39 = por %p37, %p38
      %p40 = scmp.ne.s32.totalorder %s29, %s32
      %p41 = scmp.eq.s32.totalorder %s24, 1
      %p42 = por %p40, %p41
      %p43 = scmp.ne.s32.totalorder %s32, %s33
      %p44 = scmp.eq.s32.totalorder %s24, 0
      %p45 = por %p43, %p44
      %p46 = scmp.ne.s32.totalorder %s32, %s33
      %p47 = scmp.eq.s32.totalorder %s25, 1
      %p48 = por %p46, %p47
      %p50 = scmp.ne.s32.totalorder %s33, %s49
      %p51 = scmp.eq.s32.totalorder %s25, 0
      %p52 = por %p50, %p51
      %s54 = sadd.s32 %s53, 1
      %p57 = scmp.eq.s32.totalorder %s19, 1
      %p58 = scmp.ne.s32.totalorder %s53, %s55
      %p59 = scmp.eq.s32.totalorder %s19, 0
      %p60 = por %p58, %p59
      %p61 = scmp.ne.s32.totalorder %s53, %s55
      %p62 = scmp.eq.s32.totalorder %s24, 1
      %p63 = por %p61, %p62
      %p64 = scmp.ne.s32.totalorder %s55, %s56
      %p65 = scmp.eq.s32.totalorder %s24, 0
      %p66 = por %p64, %p65
      %p67 = scmp.ne.s32.totalorder %s55, %s56
      %p68 = scmp.eq.s32.totalorder %s25, 1
      %p69 = por %p67, %p68
      %p71 = scmp.ne.s32.totalorder %s56, %s70
      %p72 = scmp.eq.s32.totalorder %s25, 0
      %p73 = por %p71, %p72
      %s75 = sadd.s32 %s74, 1
      %p78 = scmp.eq.s32.totalorder %s19, 1
      %p79 = scmp.ne.s32.totalorder %s74, %s76
      %p80 = scmp.eq.s32.totalorder %s19, 0
      %p81 = por %p79, %p80
      %p82 = scmp.ne.s32.totalorder %s74, %s76
      %p83 = scmp.eq.s32.totalorder %s24, 1
      %p84 = por %p82, %p83
      %p85 = scmp.ne.s32.totalorder %s76, %s77
      %p86 = scmp.eq.s32.totalorder %s24, 0
      %p87 = por %p85, %p86
      %p88 = scmp.ne.s32.totalorder %s76, %s77
      %p89 = scmp.eq.s32.totalorder %s25, 1
      %p90 = por %p88, %p89
      %p92 = scmp.ne.s32.totalorder %s77, %s91
      %p93 = scmp.eq.s32.totalorder %s25, 0
      %p94 = por %p92, %p93
      %s96 = sadd.s32 %s95, 1
      %p99 = scmp.eq.s32.totalorder %s19, 1
      %p100 = scmp.ne.s32.totalorder %s95, %s97
      %p101 = scmp.eq.s32.totalorder %s19, 0
      %p102 = por %p100, %p101
      %p103 = scmp.ne.s32.totalorder %s95, %s97
      %p104 = scmp.eq.s32.totalorder %s24, 1
      %p105 = por %p103, %p104
      %p106 = scmp.ne.s32.totalorder %s97, %s98
      %p107 = scmp.eq.s32.totalorder %s24, 0
      %p108 = por %p106, %p107
      %p109 = scmp.ne.s32.totalorder %s97, %s98
      %p110 = scmp.eq.s32.totalorder %s25, 1
      %p111 = por %p109, %p110
      %p113 = scmp.ne.s32.totalorder %s98, %s112
      %p114 = scmp.eq.s32.totalorder %s25, 0
      %p115 = por %p113, %p114
      %s117 = sadd.s32 %s116, 1
      %p120 = scmp.eq.s32.totalorder %s19, 1
      %p121 = scmp.ne.s32.totalorder %s116, %s118
      %p122 = scmp.eq.s32.totalorder %s19, 0
      %p123 = por %p121, %p122
      %p124 = scmp.ne.s32.totalorder %s116, %s118
      %p125 = scmp.eq.s32.totalorder %s24, 1
      %p126 = por %p124, %p125
      %p127 = scmp.ne.s32.totalorder %s118, %s119
      %p128 = scmp.eq.s32.totalorder %s24, 0
      %p129 = por %p127, %p128
      %p130 = scmp.ne.s32.totalorder %s118, %s119
      %p131 = scmp.eq.s32.totalorder %s25, 1
      %p132 = por %p130, %p131
      %p134 = scmp.ne.s32.totalorder %s119, %s133
      %p135 = scmp.eq.s32.totalorder %s25, 0
      %p136 = por %p134, %p135
      %s138 = sadd.s32 %s137, 1
      %p141 = scmp.eq.s32.totalorder %s19, 1
      %p142 = scmp.ne.s32.totalorder %s137, %s139
      %p143 = scmp.eq.s32.totalorder %s19, 0
      %p144 = por %p142, %p143
      %p145 = scmp.ne.s32.totalorder %s137, %s139
      %p146 = scmp.eq.s32.totalorder %s24, 1
      %p147 = por %p145, %p146
      %p148 = scmp.ne.s32.totalorder %s139, %s140
      %p149 = scmp.eq.s32.totalorder %s24, 0
      %p150 = por %p148, %p149
      %p151 = scmp.ne.s32.totalorder %s139, %s140
      %p152 = scmp.eq.s32.totalorder %s25, 1
      %p153 = por %p151, %p152
      %p155 = scmp.ne.s32.totalorder %s140, %s154
      %p156 = scmp.eq.s32.totalorder %s25, 0
      %p157 = por %p155, %p156
      %s158 = ssub.s32 %s19, %s26
      %p159 = scmp.eq.s32.totalorder %s158, 0
      %s161 = sadd.s32 %s160, 1
      %s162 = scalar_select %p159, %s160, %s161
      %p165 = pneg %p159
      %p166 = scmp.eq.s32.totalorder %s19, 1
      %p167 = por %p165, %p166
      %p168 = scmp.ne.s32.totalorder %s160, %s163
      %p169 = scmp.eq.s32.totalorder %s19, 0
      %p170 = por %p168, %p169
      %p171 = scmp.ne.s32.totalorder %s160, %s163
      %p172 = scmp.eq.s32.totalorder %s24, 1
      %p173 = por %p171, %p172
      %p174 = scmp.ne.s32.totalorder %s163, %s164
      %p175 = scmp.eq.s32.totalorder %s24, 0
      %p176 = por %p174, %p175
      %p177 = scmp.ne.s32.totalorder %s163, %s164
      %p178 = scmp.eq.s32.totalorder %s25, 1
      %p179 = por %p177, %p178
      %p181 = scmp.ne.s32.totalorder %s164, %s180
      %p182 = scmp.eq.s32.totalorder %s25, 0
      %p183 = por %p181, %p182
      %p184 = scmp.le.s32.totalorder 1, %s19
      %p185 = scmp.lt.s32.totalorder %s19, 3
      %p186 = pnand %p184, %p185
      %p187 = pneg %p186
      // Predicated region
      $region9: #{tpu_custom_call.1} parent=5 // pred_check
        _
      $region10: #{tpu_custom_call.1} parent=5 // pred_check_branch
        %189 = sbr.rel (%p186) target = $region12
      $region11: #{tpu_custom_call.1} parent=5 // pred_region
        %s190 = ssub.s32 %s19, 1
        // Predicated region
        $region13: #{tpu_custom_call.1} parent=11 // pred_check
          %p191 = pneg %p66
        $region14: #{tpu_custom_call.1} parent=11 // pred_check_branch
          %193 = sbr.rel (%p191) target = $region16
        $region15: #{tpu_custom_call.1} parent=11 // pred_region
          _
        $region16: #{tpu_custom_call.1} parent=11 // pred_fallthru
          _
        // Predicated region
        $region17: #{tpu_custom_call.1} parent=11 // pred_check
          %p194 = pneg %p87
        $region18: #{tpu_custom_call.1} parent=11 // pred_check_branch
          %196 = sbr.rel (%p194) target = $region20
        $region19: #{tpu_custom_call.1} parent=11 // pred_region
          _
        $region20: #{tpu_custom_call.1} parent=11 // pred_fallthru
          _
        // Predicated region
        $region21: #{tpu_custom_call.1} parent=11 // pred_check
          %p197 = pneg %p108
        $region22: #{tpu_custom_call.1} parent=11 // pred_check_branch
          %199 = sbr.rel (%p197) target = $region24
        $region23: #{tpu_custom_call.1} parent=11 // pred_region
          _
        $region24: #{tpu_custom_call.1} parent=11 // pred_fallthru
          _
        // Predicated region
        $region25: #{tpu_custom_call.1} parent=11 // pred_check
          %p200 = pneg %p129
        $region26: #{tpu_custom_call.1} parent=11 // pred_check_branch
          %202 = sbr.rel (%p200) target = $region28
        $region27: #{tpu_custom_call.1} parent=11 // pred_region
          _
        $region28: #{tpu_custom_call.1} parent=11 // pred_fallthru
          _
        // Predicated region
        $region29: #{tpu_custom_call.1} parent=11 // pred_check
          %p203 = pneg %p150
        $region30: #{tpu_custom_call.1} parent=11 // pred_check_branch
          %205 = sbr.rel (%p203) target = $region32
        $region31: #{tpu_custom_call.1} parent=11 // pred_region
          %s207 = ssub.s32 2304, 2304
          %208 = vsyncadd [#allocation6], %s207
          %s209 = sshll.u32 [#allocation5], 4
          %s210 = int_to_ptr.vmem [resolvable:$true] %s209
          %215 = dma.hbm_to_vmem [thread:$0]  %s5, 2304, %s210, [#allocation6], 256, 256, 16
        $region32: #{tpu_custom_call.1} parent=11 // pred_fallthru
          _
      $region12: #{tpu_custom_call.1} parent=5 // pred_fallthru
        _
      %p216 = scmp.lt.s32.totalorder %s19, 2
      // Predicated region
      $region33: #{tpu_custom_call.1} parent=5 // pred_check
        %p217 = pneg %p216
      $region34: #{tpu_custom_call.1} parent=5 // pred_check_branch
        %219 = sbr.rel (%p217) target = $region36
      $region35: #{tpu_custom_call.1} parent=5 // pred_region
        // Predicated region
        $region37: #{tpu_custom_call.1} parent=35 // pred_check
          %p220 = pneg %p39
        $region38: #{tpu_custom_call.1} parent=35 // pred_check_branch
          %222 = sbr.rel (%p220) target = $region40
        $region39: #{tpu_custom_call.1} parent=35 // pred_region
          %s223 = sand.u32 %s29, 1
          %s224 = scalar_lea.sflag [#allocation3], %s223
          %s225 = sand.u32 %s29, 1
          %s226 = smul.addr %s225, 32
          %s227 = scalar_lea.vmem [#allocation2], %s226
          %s229 = ssub.s32 512, 512
          %230 = vsyncadd %s224, %s229
          %s231 = smul.addr %s19, 4
          %s232 = smul.addr %s231, 128
          %s233 = scalar_lea.hbm %s0, %s232
          %s234 = sshll.u32 %s227, 4
          %s235 = int_to_ptr.vmem [resolvable:$true] %s234
          %240 = dma.hbm_to_vmem [thread:$0]  %s233, 512, %s235, %s224, 256, 256, 16
        $region40: #{tpu_custom_call.1} parent=35 // pred_fallthru
          _
      $region36: #{tpu_custom_call.1} parent=5 // pred_fallthru
        _
      %p241 = scmp.le.s32.totalorder 1, %s19
      %p242 = scmp.lt.s32.totalorder %s19, 3
      %p243 = pnand %p241, %p242
      %p244 = pneg %p243
      // Predicated region
      $region41: #{tpu_custom_call.1} parent=5 // pred_check
        _
      $region42: #{tpu_custom_call.1} parent=5 // pred_check_branch
        %246 = sbr.rel (%p243) target = $region44
      $region43: #{tpu_custom_call.1} parent=5 // pred_region
        %s247 = ssub.s32 %s19, 1
        %s248 = sand.u32 %s32, 1
        %s249 = scalar_lea.sflag [#allocation3], %s248
        %s250 = sand.u32 %s32, 1
        %s251 = smul.addr %s250, 32
        %s252 = scalar_lea.vmem [#allocation2], %s251
        // Predicated region
        $region45: #{tpu_custom_call.1} parent=43 // pred_check
          %p253 = pneg %p45
        $region46: #{tpu_custom_call.1} parent=43 // pred_check_branch
          %255 = sbr.rel (%p253) target = $region48
        $region47: #{tpu_custom_call.1} parent=43 // pred_region
          %256 = dma.done %s249, 512
        $region48: #{tpu_custom_call.1} parent=43 // pred_fallthru
          _
        // Predicated region
        $region49: #{tpu_custom_call.1} parent=43 // pred_check
          %p257 = pneg %p150
        $region50: #{tpu_custom_call.1} parent=43 // pred_check_branch
          %259 = sbr.rel (%p257) target = $region52
        $region51: #{tpu_custom_call.1} parent=43 // pred_region
          %260 = dma.done [#allocation6], 2304
        $region52: #{tpu_custom_call.1} parent=43 // pred_fallthru
          _
        %s261 = sand.u32 %s32, 1
        %s262 = scalar_lea.sflag [#allocation3], %s261
        %s263 = sand.u32 %s32, 1
        %s264 = smul.addr %s263, 32
        %s265 = scalar_lea.vmem [#allocation2], %s264
        %p266 = pneg %p45
        %p267 = pneg %p42
        %p268 = pneg %p66
        %p269 = pneg %p63
        %p270 = pneg %p87
        %p271 = pneg %p84
        %p272 = pneg %p108
        %p273 = pneg %p105
        %p274 = pneg %p129
        %p275 = pneg %p126
        %p276 = pneg %p150
        %p277 = pneg %p147
        %p278 = pneg %p176
        %p279 = pneg %p173
        %s280 = sand.u32 %s163, 1
        %s281 = scalar_lea.sflag [#allocation4], %s280
        %s282 = sand.u32 %s163, 1
        %s283 = smul.addr %s282, 32
        %s284 = scalar_lea.vmem [#allocation7], %s283
        %v285 = vld [vmem:[%s1] sm:$0xff]
        %v286 = vld [vmem:[%s2] sm:$0xff]
        %v287 = vld [vmem:[%s3] sm:$0xff]
        %v288 = vld [vmem:[%s3 + $0x8] sm:$0xff]
        %v289 = vld [vmem:[%s4] sm:$0xff]
        %v290 = vld [vmem:[%s4 + $0x8] sm:$0xff]
        %v291 = vld [vmem:[%s4 + $0x10] sm:$0xff]
        %v292 = vld [vmem:[%s4 + $0x18] sm:$0xff]
        %v293 = vld [vmem:[%s252] sm:$0xff]
        %v294 = vld [vmem:[%s252 + $0x8] sm:$0xff]
        %v295 = vld [vmem:[%s252 + $0x10] sm:$0xff]
        %v296 = vld [vmem:[%s252 + $0x18] sm:$0xff]
        %298 = vset.pattern.permute.xlu0 0
        %299 = vperm.xlu0 %298, %v289
        %v300 = vpop.permute.xlu0 %299
        %vm302 = vcmask 130048
        %v304 = vsel %vm302, %v285, 0
        %306 = vmatprep.subr.mxu0 %v294
        %307 = vmatpush1.msra.mxu0 %v293
        %308 = vmatprep.subr.mxu0 %v296
        %309 = vmatpush1.msra.mxu0 %v295
        %310 = vmatprep.subr.mxu0 0.0
        %311 = vmatpush1.msra.mxu0 0.0
        %312 = vmatprep.subr.mxu0 0.0
        %313 = vmatpush1.msra.mxu0 0.0
        %314 = vmatprep.subr.mxu0 0.0
        %315 = vmatpush1.msra.mxu0 0.0
        %316 = vmatprep.subr.mxu0 0.0
        %317 = vmatpush1.msra.mxu0 0.0
        %318 = vmatprep.subr.mxu0 0.0
        %319 = vmatpush1.msra.mxu0 0.0
        %320 = vmatprep.subr.mxu0 0.0
        %321 = vmatpush1.msra.mxu0 0.0
        %322 = vmatprep.subr.mxu0 0.0
        %323 = vmatpush1.msra.mxu0 0.0
        %324 = vmatprep.subr.mxu0 0.0
        %325 = vmatpush1.msra.mxu0 0.0
        %326 = vmatprep.subr.mxu0 0.0
        %327 = vmatpush1.msra.mxu0 0.0
        %328 = vmatprep.subr.mxu0 0.0
        %329 = vmatpush1.msra.mxu0 0.0
        %330 = vmatprep.subr.mxu0 0.0
        %331 = vmatpush1.msra.mxu0 0.0
        %332 = vmatprep.subr.mxu0 0.0
        %333 = vmatpush1.msra.mxu0 0.0
        %334 = vmatprep.subr.mxu0 0.0
        %335 = vmatpush1.msra.mxu0 0.0
        %336 = vmatprep.subr.mxu0 0.0
        %337 = vmatpush1.msra.mxu0 0.0
        %338 = vmatprep.subr.mxu0 0.0
        %339 = vmatpush1.msra.mxu0 0.0
        %340 = vmatprep.subr.mxu0 0.0
        %341 = vmatpush1.msra.mxu0 0.0
        %342 = vmatprep.subr.mxu0 0.0
        %343 = vmatpush1.msra.mxu0 0.0
        %344 = vmatprep.subr.mxu0 0.0
        %345 = vmatpush1.msra.mxu0 0.0
        %346 = vmatprep.subr.mxu0 0.0
        %347 = vmatpush1.msra.mxu0 0.0
        %348 = vmatprep.subr.mxu0 0.0
        %349 = vmatpush1.msra.mxu0 0.0
        %350 = vmatprep.subr.mxu0 0.0
        %351 = vmatpush1.msra.mxu0 0.0
        %352 = vmatprep.subr.mxu0 0.0
        %353 = vmatpush1.msra.mxu0 0.0
        %354 = vmatprep.subr.mxu0 0.0
        %355 = vmatpush1.msra.mxu0 0.0
        %356 = vmatprep.subr.mxu0 0.0
        %357 = vmatpush1.msra.mxu0 0.0
        %358 = vmatprep.subr.mxu0 0.0
        %359 = vmatpush1.msra.mxu0 0.0
        %360 = vmatprep.subr.mxu0 0.0
        %361 = vmatpush1.msra.mxu0 0.0
        %362 = vmatprep.subr.mxu0 0.0
        %363 = vmatpush1.msra.mxu0 0.0
        %364 = vmatprep.subr.mxu0 0.0
        %365 = vmatpush1.msra.mxu0 0.0
        %366 = vmatprep.subr.mxu0 0.0
        %367 = vmatpush1.msra.mxu0 0.0
        %368 = vmatprep.subr.mxu0 0.0
        %369 = vmatpush1.msra.mxu0 0.0
        %370 = vmatprep.mubr.f32.mxu0 0.0
        %371 = vmatmul.mubr.f32.gmra.mrb[0].mxu0 %v304
        %v372 = vpop.f32.mrb[0].mxu0
        %v373 = vadd.f32 %v300, %v372
        %v374 = vpop.f32.mrb[0].mxu0
        %v375 = vadd.f32 %v300, %v374
        %376 = vdwg.mxu0
        %v377 = vmax.f32 %v373, 0.0
        %v378 = vmax.f32 %v375, 0.0
        %379 = vrot.lane.b32.xlu0 %v377, 17
        %v380 = vpop.permute.xlu0 %379
        %381 = vrot.lane.b32.xlu0 %v378, 17
        %v382 = vpop.permute.xlu0 %381
        %v383 = vlaneseq
        %v384 = vand.u32 %v383, 127
        %vm385 = vcmp.lt.s32.totalorder %v384, 17
        %v386 = vsel %vm385, %v380, %v382
        %v387 = vsel %vm385, %v382, %v380
        %388 = vrot.lane.b32.xlu0 %v377, 16
        %v389 = vpop.permute.xlu0 %388
        %390 = vrot.lane.b32.xlu0 %v378, 16
        %v391 = vpop.permute.xlu0 %390
        %vm392 = vcmp.lt.s32.totalorder %v384, 16
        %v393 = vsel %vm392, %v389, %v391
        %v394 = vsel %vm392, %v391, %v389
        %395 = vrot.lane.b32.xlu0 %v377, 15
        %v396 = vpop.permute.xlu0 %395
        %397 = vrot.lane.b32.xlu0 %v378, 15
        %v398 = vpop.permute.xlu0 %397
        %vm399 = vcmp.lt.s32.totalorder %v384, 15
        %v400 = vsel %vm399, %v396, %v398
        %v401 = vsel %vm399, %v398, %v396
        %402 = vrot.lane.b32.xlu0 %v377, 1
        %v403 = vpop.permute.xlu0 %402
        %404 = vrot.lane.b32.xlu0 %v378, 1
        %v405 = vpop.permute.xlu0 %404
        %vm406 = vcmp.lt.s32.totalorder %v384, 1
        %v407 = vsel %vm406, %v403, %v405
        %v408 = vsel %vm406, %v405, %v403
        %409 = vrot.lane.b32.xlu0 %v377, 127
        %v410 = vpop.permute.xlu0 %409
        %411 = vrot.lane.b32.xlu0 %v378, 127
        %v412 = vpop.permute.xlu0 %411
        %vm413 = vcmp.lt.s32.totalorder %v384, 127
        %v414 = vsel %vm413, %v410, %v412
        %v415 = vsel %vm413, %v412, %v410
        %416 = vrot.lane.b32.xlu0 %v377, 113
        %v417 = vpop.permute.xlu0 %416
        %418 = vrot.lane.b32.xlu0 %v378, 113
        %v419 = vpop.permute.xlu0 %418
        %vm420 = vcmp.lt.s32.totalorder %v384, 113
        %v421 = vsel %vm420, %v417, %v419
        %v422 = vsel %vm420, %v419, %v417
        %423 = vrot.lane.b32.xlu0 %v377, 112
        %v424 = vpop.permute.xlu0 %423
        %425 = vrot.lane.b32.xlu0 %v378, 112
        %v426 = vpop.permute.xlu0 %425
        %vm427 = vcmp.lt.s32.totalorder %v384, 112
        %v428 = vsel %vm427, %v424, %v426
        %v429 = vsel %vm427, %v426, %v424
        %430 = vrot.lane.b32.xlu0 %v377, 111
        %v431 = vpop.permute.xlu0 %430
        %432 = vrot.lane.b32.xlu0 %v378, 111
        %v433 = vpop.permute.xlu0 %432
        %vm434 = vcmp.lt.s32.totalorder %v384, 111
        %v435 = vsel %vm434, %v431, %v433
        %v436 = vsel %vm434, %v433, %v431
        %v437 = vld [vmem:[#allocation5] sm:$0xff]
        %v438 = vld [vmem:[#allocation5 + $0x8] sm:$0xff]
        %v439 = vld [vmem:[#allocation5 + $0x10] sm:$0xff]
        %v440 = vld [vmem:[#allocation5 + $0x18] sm:$0xff]
        %v441 = vld [vmem:[#allocation5 + $0x20] sm:$0xff]
        %v442 = vld [vmem:[#allocation5 + $0x28] sm:$0xff]
        %v443 = vld [vmem:[#allocation5 + $0x30] sm:$0xff]
        %v444 = vld [vmem:[#allocation5 + $0x38] sm:$0xff]
        %v445 = vld [vmem:[#allocation5 + $0x40] sm:$0xff]
        %v446 = vld [vmem:[#allocation5 + $0x48] sm:$0xff]
        %v447 = vld [vmem:[#allocation5 + $0x50] sm:$0xff]
        %v448 = vld [vmem:[#allocation5 + $0x58] sm:$0xff]
        %v449 = vld [vmem:[#allocation5 + $0x60] sm:$0xff]
        %v450 = vld [vmem:[#allocation5 + $0x68] sm:$0xff]
        %v451 = vld [vmem:[#allocation5 + $0x70] sm:$0xff]
        %v452 = vld [vmem:[#allocation5 + $0x78] sm:$0xff]
        %v453 = vld [vmem:[#allocation5 + $0x80] sm:$0xff]
        %v454 = vld [vmem:[#allocation5 + $0x88] sm:$0xff]
        %v455 = vmul.f32 %v387, %v437
        %v456 = vmul.f32 %v386, %v438
        %v457 = vmul.f32 %v394, %v439
        %v458 = vmul.f32 %v393, %v440
        %v459 = vmul.f32 %v401, %v441
        %v460 = vmul.f32 %v400, %v442
        %v461 = vmul.f32 %v408, %v443
        %v462 = vmul.f32 %v407, %v444
        %v463 = vmul.f32 %v377, %v445
        %v464 = vmul.f32 %v378, %v446
        %v465 = vmul.f32 %v414, %v447
        %v466 = vmul.f32 %v415, %v448
        %v467 = vmul.f32 %v421, %v449
        %v468 = vmul.f32 %v422, %v450
        %v469 = vmul.f32 %v428, %v451
        %v470 = vmul.f32 %v429, %v452
        %v471 = vmul.f32 %v435, %v453
        %v472 = vmul.f32 %v436, %v454
        %474 = vset.pattern.permute.xlu0 0
        %475 = vperm.xlu0 %474, %v290
        %v476 = vpop.permute.xlu0 %475
        %vm478 = vcmask 588800
        %v480 = vsel %vm478, %v286, 0
        %482 = vmatprep.subr.mxu0 %v456
        %483 = vmatpush1.msra.mxu0 %v455
        %484 = vmatprep.subr.mxu0 %v458
        %485 = vmatpush1.msra.mxu0 %v457
        %486 = vmatprep.subr.mxu0 %v460
        %487 = vmatpush1.msra.mxu0 %v459
        %488 = vmatprep.subr.mxu0 %v462
        %489 = vmatpush1.msra.mxu0 %v461
        %490 = vmatprep.subr.mxu0 %v464
        %491 = vmatpush1.msra.mxu0 %v463
        %492 = vmatprep.subr.mxu0 %v466
        %493 = vmatpush1.msra.mxu0 %v465
        %494 = vmatprep.subr.mxu0 %v468
        %495 = vmatpush1.msra.mxu0 %v467
        %496 = vmatprep.subr.mxu0 %v470
        %497 = vmatpush1.msra.mxu0 %v469
        %498 = vmatprep.subr.mxu0 %v472
        %499 = vmatpush1.msra.mxu0 %v471
        %500 = vmatprep.subr.mxu0 0.0
        %501 = vmatpush1.msra.mxu0 0.0
        %502 = vmatprep.subr.mxu0 0.0
        %503 = vmatpush1.msra.mxu0 0.0
        %504 = vmatprep.subr.mxu0 0.0
        %505 = vmatpush1.msra.mxu0 0.0
        %506 = vmatprep.subr.mxu0 0.0
        %507 = vmatpush1.msra.mxu0 0.0
        %508 = vmatprep.subr.mxu0 0.0
        %509 = vmatpush1.msra.mxu0 0.0
        %510 = vmatprep.subr.mxu0 0.0
        %511 = vmatpush1.msra.mxu0 0.0
        %512 = vmatprep.subr.mxu0 0.0
        %513 = vmatpush1.msra.mxu0 0.0
        %514 = vmatprep.subr.mxu0 0.0
        %515 = vmatpush1.msra.mxu0 0.0
        %516 = vmatprep.subr.mxu0 0.0
        %517 = vmatpush1.msra.mxu0 0.0
        %518 = vmatprep.subr.mxu0 0.0
        %519 = vmatpush1.msra.mxu0 0.0
        %520 = vmatprep.subr.mxu0 0.0
        %521 = vmatpush1.msra.mxu0 0.0
        %522 = vmatprep.subr.mxu0 0.0
        %523 = vmatpush1.msra.mxu0 0.0
        %524 = vmatprep.subr.mxu0 0.0
        %525 = vmatpush1.msra.mxu0 0.0
        %526 = vmatprep.subr.mxu0 0.0
        %527 = vmatpush1.msra.mxu0 0.0
        %528 = vmatprep.subr.mxu0 0.0
        %529 = vmatpush1.msra.mxu0 0.0
        %530 = vmatprep.subr.mxu0 0.0
        %531 = vmatpush1.msra.mxu0 0.0
        %532 = vmatprep.subr.mxu0 0.0
        %533 = vmatpush1.msra.mxu0 0.0
        %534 = vmatprep.subr.mxu0 0.0
        %535 = vmatpush1.msra.mxu0 0.0
        %536 = vmatprep.subr.mxu0 0.0
        %537 = vmatpush1.msra.mxu0 0.0
        %538 = vmatprep.subr.mxu0 0.0
        %539 = vmatpush1.msra.mxu0 0.0
        %540 = vmatprep.subr.mxu0 0.0
        %541 = vmatpush1.msra.mxu0 0.0
        %542 = vmatprep.subr.mxu0 0.0
        %543 = vmatpush1.msra.mxu0 0.0
        %544 = vmatprep.subr.mxu0 0.0
        %545 = vmatpush1.msra.mxu0 0.0
        %546 = vmatprep.mubr.f32.mxu0 0.0
        %547 = vmatmul.mubr.f32.gmra.mrb[0].mxu0 %v480
        %v548 = vpop.f32.mrb[0].mxu0
        %v549 = vadd.f32 %v476, %v548
        %v550 = vpop.f32.mrb[0].mxu0
        %v551 = vadd.f32 %v476, %v550
        %552 = vdwg.mxu0
        %v553 = vmax.f32 %v549, 0.0
        %v554 = vmax.f32 %v551, 0.0
        %556 = vset.pattern.permute.xlu0 0
        %557 = vperm.xlu0 %556, %v291
        %v558 = vpop.permute.xlu0 %557
        %561 = vset.pattern.permute.xlu0 0
        %562 = vperm.xlu0 %561, %v292
        %v563 = vpop.permute.xlu0 %562
        %vm565 = vcmask 64512
        %v567 = vsel %vm565, %v287, 0
        %v570 = vsel %vm565, %v288, 0
        %572 = vmatprep.subr.mxu0 %v554
        %573 = vmatpush1.msra.mxu0 %v553
        %574 = vmatprep.subr.mxu0 0.0
        %575 = vmatpush1.msra.mxu0 0.0
        %576 = vmatprep.subr.mxu0 0.0
        %577 = vmatpush1.msra.mxu0 0.0
        %578 = vmatprep.subr.mxu0 0.0
        %579 = vmatpush1.msra.mxu0 0.0
        %580 = vmatprep.subr.mxu0 0.0
        %581 = vmatpush1.msra.mxu0 0.0
        %582 = vmatprep.subr.mxu0 0.0
        %583 = vmatpush1.msra.mxu0 0.0
        %584 = vmatprep.subr.mxu0 0.0
        %585 = vmatpush1.msra.mxu0 0.0
        %586 = vmatprep.subr.mxu0 0.0
        %587 = vmatpush1.msra.mxu0 0.0
        %588 = vmatprep.subr.mxu0 0.0
        %589 = vmatpush1.msra.mxu0 0.0
        %590 = vmatprep.subr.mxu0 0.0
        %591 = vmatpush1.msra.mxu0 0.0
        %592 = vmatprep.subr.mxu0 0.0
        %593 = vmatpush1.msra.mxu0 0.0
        %594 = vmatprep.subr.mxu0 0.0
        %595 = vmatpush1.msra.mxu0 0.0
        %596 = vmatprep.subr.mxu0 0.0
        %597 = vmatpush1.msra.mxu0 0.0
        %598 = vmatprep.subr.mxu0 0.0
        %599 = vmatpush1.msra.mxu0 0.0
        %600 = vmatprep.subr.mxu0 0.0
        %601 = vmatpush1.msra.mxu0 0.0
        %602 = vmatprep.subr.mxu0 0.0
        %603 = vmatpush1.msra.mxu0 0.0
        %604 = vmatprep.subr.mxu0 0.0
        %605 = vmatpush1.msra.mxu0 0.0
        %606 = vmatprep.subr.mxu0 0.0
        %607 = vmatpush1.msra.mxu0 0.0
        %608 = vmatprep.subr.mxu0 0.0
        %609 = vmatpush1.msra.mxu0 0.0
        %610 = vmatprep.subr.mxu0 0.0
        %611 = vmatpush1.msra.mxu0 0.0
        %612 = vmatprep.subr.mxu0 0.0
        %613 = vmatpush1.msra.mxu0 0.0
        %614 = vmatprep.subr.mxu0 0.0
        %615 = vmatpush1.msra.mxu0 0.0
        %616 = vmatprep.subr.mxu0 0.0
        %617 = vmatpush1.msra.mxu0 0.0
        %618 = vmatprep.subr.mxu0 0.0
        %619 = vmatpush1.msra.mxu0 0.0
        %620 = vmatprep.subr.mxu0 0.0
        %621 = vmatpush1.msra.mxu0 0.0
        %622 = vmatprep.subr.mxu0 0.0
        %623 = vmatpush1.msra.mxu0 0.0
        %624 = vmatprep.subr.mxu0 0.0
        %625 = vmatpush1.msra.mxu0 0.0
        %626 = vmatprep.subr.mxu0 0.0
        %627 = vmatpush1.msra.mxu0 0.0
        %628 = vmatprep.subr.mxu0 0.0
        %629 = vmatpush1.msra.mxu0 0.0
        %630 = vmatprep.subr.mxu0 0.0
        %631 = vmatpush1.msra.mxu0 0.0
        %632 = vmatprep.subr.mxu0 0.0
        %633 = vmatpush1.msra.mxu0 0.0
        %634 = vmatprep.subr.mxu0 0.0
        %635 = vmatpush1.msra.mxu0 0.0
        %636 = vmatprep.mubr.f32.mxu0 0.0
        %637 = vmatmul.mubr.f32.gmra.mrb[0].mxu0 %v567
        %v638 = vpop.f32.mrb[0].mxu0
        %v639 = vadd.f32 %v558, %v638
        %v640 = vpop.f32.mrb[0].mxu0
        %v641 = vadd.f32 %v558, %v640
        %642 = vmatprep.mubr.f32.mxu0 0.0
        %643 = vmatmul.mubr.f32.gmra.mrb[0].mxu0 %v570
        %v644 = vpop.f32.mrb[0].mxu0
        %v645 = vadd.f32 %v563, %v644
        %v646 = vpop.f32.mrb[0].mxu0
        %v647 = vadd.f32 %v563, %v646
        %648 = vdwg.mxu0
        %v649 = vadd.f32 %v639, %v293
        %v650 = vadd.f32 %v641, %v294
        %v651 = vadd.f32 %v645, %v295
        %v652 = vadd.f32 %v647, %v296
        %v653 = vmax.f32 %v649, 0.0
        %v654 = vmax.f32 %v650, 0.0
        %v655 = vmax.f32 %v651, 0.0
        %v656 = vmax.f32 %v652, 0.0
        %657 = vst [vmem:[%s284] sm:$0xff] %v653
        %658 = vst [vmem:[%s284 + $0x8] sm:$0xff] %v654
        %659 = vst [vmem:[%s284 + $0x10] sm:$0xff] %v655
        %660 = vst [vmem:[%s284 + $0x18] sm:$0xff] %v656
        %s661 = sand.u32 %s163, 1
        %s662 = scalar_lea.sflag [#allocation4], %s661
        %s663 = sand.u32 %s163, 1
        %s664 = smul.addr %s663, 32
        %s665 = scalar_lea.vmem [#allocation7], %s664
        // Predicated region
        $region53: #{tpu_custom_call.1} parent=43 // pred_check
          %p666 = pneg %p173
        $region54: #{tpu_custom_call.1} parent=43 // pred_check_branch
          %668 = sbr.rel (%p666) target = $region56
        $region55: #{tpu_custom_call.1} parent=43 // pred_region
          %s670 = ssub.s32 512, 512
          %671 = vsyncadd %s662, %s670
          %s672 = smul.addr %s24, 4
          %s673 = smul.addr %s672, 128
          %s674 = scalar_lea.hbm %s6, %s673
          %s675 = sshll.u32 %s665, 4
          %s676 = int_to_ptr.vmem [resolvable:$true] %s675
          %681 = dma.vmem_to_hbm [thread:$0]  %s676, 512, %s674, %s662, 256, 256, 16
        $region56: #{tpu_custom_call.1} parent=43 // pred_fallthru
          _
      $region44: #{tpu_custom_call.1} parent=5 // pred_fallthru
        _
      %p682 = scmp.le.s32.totalorder 2, %s19
      // Predicated region
      $region57: #{tpu_custom_call.1} parent=5 // pred_check
        %p683 = pneg %p682
      $region58: #{tpu_custom_call.1} parent=5 // pred_check_branch
        %685 = sbr.rel (%p683) target = $region60
      $region59: #{tpu_custom_call.1} parent=5 // pred_region
        %s686 = ssub.s32 %s19, 2
        // Predicated region
        $region61: #{tpu_custom_call.1} parent=59 // pred_check
          %p687 = pneg %p179
        $region62: #{tpu_custom_call.1} parent=59 // pred_check_branch
          %689 = sbr.rel (%p687) target = $region64
        $region63: #{tpu_custom_call.1} parent=59 // pred_region
          %s690 = sand.u32 %s164, 1
          %s691 = scalar_lea.sflag [#allocation4], %s690
          %s692 = sand.u32 %s164, 1
          %s693 = smul.addr %s692, 32
          %s694 = scalar_lea.vmem [#allocation7], %s693
          %695 = dma.done %s691, 512
        $region64: #{tpu_custom_call.1} parent=59 // pred_fallthru
          _
      $region60: #{tpu_custom_call.1} parent=5 // pred_fallthru
        _
    $region6: #{tpu_custom_call.1} parent=1 // loop_footer
      %s23 = sadd.s32 1, %s19
    $region7: #{tpu_custom_call.1} parent=1 // loop_footer_branch
      %18 = sbr.rel target = $region3
    $region8: #{tpu_custom_call.1} parent=1 // loop_exit
      _
    %696 = vsyncpa [#allocation3], 1
    %s697 = scalar_lea.sflag [#allocation3], 1
    %698 = vsyncpa %s697, 1
    %699 = vsyncpa [#allocation6], 1
    %700 = vsyncpa [#allocation4], 1
    %s701 = scalar_lea.sflag [#allocation4], 1
    %702 = vsyncpa %s701, 1

</llo_original>
